<compile_context>
chip_gen: v7x
topology: tpu7x:2x2x1
jax: 0.10.0
libtpu: 0.0.40
codegen_flags: <defaults>
</compile_context>

<pallas_src>
import functools

import jax
import jax.numpy as jnp
import numpy as np
from jax import lax
from jax.experimental import pallas as pl
from jax.experimental.pallas import tpu as pltpu


def sag_kernel(x_ref, w1_ref, b1_ref, w2_ref, b2_ref, out_ref):
    # x:  (TM, C)      f32   one tile of flattened pixels
    # w1: (C, RP)      f32   fc1 weight, reduction dim padded to 128
    # b1: (1, RP)      f32
    # w2: (RP, OP)     f32   fc2 weight, out-channel dim padded to 128
    # b2: (1, OP)      f32
    # out:(TM, OP)     f32   only column 0 is meaningful
    h = jnp.dot(x_ref[...], w1_ref[...], preferred_element_type=jnp.float32)
    h = jnp.maximum(h + b1_ref[...], 0.0)            # ReLU; padded cols stay 0
    y = jnp.dot(h, w2_ref[...], preferred_element_type=jnp.float32)
    y = y + b2_ref[...]
    out_ref[...] = jax.nn.sigmoid(y)                  # padded cols -> 0.5 (discarded)


@functools.partial(jax.jit, static_argnames=("tm",))
def spatial_attention_gate(x, w1, b1, w2, b2, *, tm=256):
    """x: (N, C, H, W) f32.  w1: (R, C, 1, 1), b1: (R,), w2: (1, R, 1, 1), b2: (1,)."""
    N, C, H, W = x.shape
    R = w1.shape[0]

    LANE = 128
    RP = LANE * ((R + LANE - 1) // LANE)     # padded hidden width
    OP = LANE                                # padded output width (1 -> 128)

    # 1x1 conv weights as matmul operands, zero-padded to lane multiples.
    w1_mat = w1.reshape(R, C).T.astype(jnp.float32)            # (C, R)
    w2_mat = w2.reshape(1, R).T.astype(jnp.float32)            # (R, 1)
    w1_p = jnp.zeros((C, RP), jnp.float32).at[:, :R].set(w1_mat)
    b1_p = jnp.zeros((1, RP), jnp.float32).at[:, :R].set(b1.reshape(1, R))
    w2_p = jnp.zeros((RP, OP), jnp.float32).at[:R, :1].set(w2_mat)
    b2_p = jnp.zeros((1, OP), jnp.float32).at[:, :1].set(b2.reshape(1, 1))

    # NCHW -> (M, C), row order (n, h, w).  No im2col: convs are 1x1.
    M = N * H * W
    xm = jnp.transpose(x, (0, 2, 3, 1)).reshape(M, C).astype(jnp.float32)
    n_tiles = pl.cdiv(M, tm)
    Mp = n_tiles * tm
    if Mp != M:
        xm = jnp.pad(xm, ((0, Mp - M), (0, 0)))

    cost = pl.CostEstimate(
        flops=2 * Mp * C * RP + 2 * Mp * RP * OP,
        transcendentals=Mp * OP,
        bytes_accessed=(xm.size + w1_p.size + w2_p.size + Mp * OP) * 4,
    )

    out = pl.pallas_call(
        sag_kernel,
        out_shape=jax.ShapeDtypeStruct((Mp, OP), jnp.float32),
        grid=(n_tiles,),
        in_specs=[
            pl.BlockSpec((tm, C), lambda i: (i, 0)),     # streamed pixel tiles
            pl.BlockSpec((C, RP), lambda i: (0, 0)),     # resident weights:
            pl.BlockSpec((1, RP), lambda i: (0, 0)),     #   constant block index
            pl.BlockSpec((RP, OP), lambda i: (0, 0)),    #   => fetched once
            pl.BlockSpec((1, OP), lambda i: (0, 0)),
        ],
        out_specs=pl.BlockSpec((tm, OP), lambda i: (i, 0)),
        compiler_params=pltpu.CompilerParams(
            dimension_semantics=("parallel",),           # tiles independent
            vmem_limit_bytes=32 * 1024 * 1024,
        ),
        cost_estimate=cost,
    )(xm, w1_p, b1_p, w2_p, b2_p)

    out = out[:M, :1].reshape(N, H, W, 1)
    return jnp.transpose(out, (0, 3, 1, 2))              # (N, 1, H, W)


def _reference(x, w1, b1, w2, b2):
    """Pure-JAX reference of the PyTorch forward."""
    dn = ("NCHW", "OIHW", "NCHW")
    y = lax.conv_general_dilated(x, w1, (1, 1), "VALID", dimension_numbers=dn)
    y = y + b1.reshape(1, -1, 1, 1)
    y = jnp.maximum(y, 0.0)
    y = lax.conv_general_dilated(y, w2, (1, 1), "VALID", dimension_numbers=dn)
    y = y + b2.reshape(1, -1, 1, 1)
    return jax.nn.sigmoid(y)


if __name__ == "__main__":
    key = jax.random.PRNGKey(0)
    kx, kw1, kb1, kw2, kb2 = jax.random.split(key, 5)

    # Small shapes consistent with the module: channel=32, reduction=16.
    N, C, H, W = 2, 32, 16, 16
    R = 16

    x = jax.random.normal(kx, (N, C, H, W), dtype=jnp.float32)

    # PyTorch Conv2d default init: uniform(-1/sqrt(fan_in), 1/sqrt(fan_in)).
    bound1 = 1.0 / np.sqrt(C * 1 * 1)
    w1 = jax.random.uniform(kw1, (R, C, 1, 1), minval=-bound1, maxval=bound1,
                            dtype=jnp.float32)
    b1 = jax.random.uniform(kb1, (R,), minval=-bound1, maxval=bound1,
                            dtype=jnp.float32)
    bound2 = 1.0 / np.sqrt(R * 1 * 1)
    w2 = jax.random.uniform(kw2, (1, R, 1, 1), minval=-bound2, maxval=bound2,
                            dtype=jnp.float32)
    b2 = jax.random.uniform(kb2, (1,), minval=-bound2, maxval=bound2,
                            dtype=jnp.float32)

    out = spatial_attention_gate(x, w1, b1, w2, b2)
    jax.block_until_ready(out)
    assert out.shape == (N, 1, H, W)

    ref = _reference(x, w1, b1, w2, b2)
    np.testing.assert_allclose(np.asarray(out), np.asarray(ref),
                               atol=1e-5, rtol=1e-4)

    print("KERNEL_OK")
</pallas_src>

<mosaic_0001>
module attributes {stable_mosaic.version = 11 : i64} {
  func.func @sag_kernel(%arg0: i32, %arg1: memref<256x32xf32, #tpu.memory_space<vmem>>, %arg2: memref<32x128xf32, #tpu.memory_space<vmem>>, %arg3: memref<1x128xf32, #tpu.memory_space<vmem>>, %arg4: memref<128x128xf32, #tpu.memory_space<vmem>>, %arg5: memref<1x128xf32, #tpu.memory_space<vmem>>, %arg6: memref<256x128xf32, #tpu.memory_space<vmem>>) attributes {dimension_semantics = [#tpu.dimension_semantics<parallel>], iteration_bounds = array<i64: 2>, scalar_prefetch = 0 : i64, scratch_operands = 0 : i64, tpu.core_type = #tpu.core_type<tc>, window_params = [{transform_indices = @transform_0, window_bounds = array<i64: 256, 32>}, {pipeline_mode = #tpu.pipeline_mode<synchronous>, transform_indices = @transform_1, window_bounds = array<i64: 32, 128>}, {pipeline_mode = #tpu.pipeline_mode<synchronous>, transform_indices = @transform_2, window_bounds = array<i64: 1, 128>}, {pipeline_mode = #tpu.pipeline_mode<synchronous>, transform_indices = @transform_3, window_bounds = array<i64: 128, 128>}, {pipeline_mode = #tpu.pipeline_mode<synchronous>, transform_indices = @transform_4, window_bounds = array<i64: 1, 128>}, {transform_indices = @transform_5, window_bounds = array<i64: 256, 128>}]} {
    %c0 = arith.constant 0 : index
    %c0_0 = arith.constant 0 : index
    %0 = vector.load %arg1[%c0, %c0_0] : memref<256x32xf32, #tpu.memory_space<vmem>>, vector<256x32xf32>
    %c0_1 = arith.constant 0 : index
    %c0_2 = arith.constant 0 : index
    %1 = vector.load %arg2[%c0_1, %c0_2] : memref<32x128xf32, #tpu.memory_space<vmem>>, vector<32x128xf32>
    %cst = arith.constant dense<0.000000e+00> : vector<256x128xf32>
    %2 = tpu.matmul %0, %1, %cst {dimension_numbers = #tpu.dot_dimension_numbers<[1], [0], [0], [1], [0, 0, 1, 1], [], []>} : vector<256x32xf32>, vector<32x128xf32>, vector<256x128xf32> -> vector<256x128xf32>
    %c0_3 = arith.constant 0 : index
    %c0_4 = arith.constant 0 : index
    %3 = vector.load %arg3[%c0_3, %c0_4] : memref<1x128xf32, #tpu.memory_space<vmem>>, vector<1x128xf32>
    %4 = vector.broadcast %3 : vector<1x128xf32> to vector<256x128xf32>
    %5 = arith.addf %2, %4 : vector<256x128xf32>
    %cst_5 = arith.constant 0.000000e+00 : f32
    %6 = vector.broadcast %cst_5 : f32 to vector<256x128xf32>
    %7 = arith.maximumf %5, %6 : vector<256x128xf32>
    %c0_6 = arith.constant 0 : index
    %c0_7 = arith.constant 0 : index
    %8 = vector.load %arg4[%c0_6, %c0_7] : memref<128x128xf32, #tpu.memory_space<vmem>>, vector<128x128xf32>
    %cst_8 = arith.constant dense<0.000000e+00> : vector<256x128xf32>
    %9 = tpu.matmul %7, %8, %cst_8 {dimension_numbers = #tpu.dot_dimension_numbers<[1], [0], [0], [1], [0, 0, 1, 1], [], []>} : vector<256x128xf32>, vector<128x128xf32>, vector<256x128xf32> -> vector<256x128xf32>
    %c0_9 = arith.constant 0 : index
    %c0_10 = arith.constant 0 : index
    %10 = vector.load %arg5[%c0_9, %c0_10] : memref<1x128xf32, #tpu.memory_space<vmem>>, vector<1x128xf32>
    %11 = vector.broadcast %10 : vector<1x128xf32> to vector<256x128xf32>
    %12 = arith.addf %9, %11 : vector<256x128xf32>
    %13 = arith.negf %12 : vector<256x128xf32>
    %14 = math.exp %13 : vector<256x128xf32>
    %cst_11 = arith.constant 1.000000e+00 : f32
    %15 = vector.broadcast %cst_11 : f32 to vector<256x128xf32>
    %16 = arith.addf %15, %14 : vector<256x128xf32>
    %17 = arith.divf %15, %16 : vector<256x128xf32>
    %c0_12 = arith.constant 0 : index
    %c0_13 = arith.constant 0 : index
    %18 = vector.load %arg6[%c0_12, %c0_13] : memref<256x128xf32, #tpu.memory_space<vmem>>, vector<256x128xf32>
    tpu.vector_store %arg6[%c0_12, %c0_13], %17 {strides = array<i32>} : memref<256x128xf32, #tpu.memory_space<vmem>>, vector<256x128xf32>,
    return
  }
  func.func @transform_0(%arg0: i32) -> (i32, i32) {
    %c0_i32 = arith.constant 0 : i32
    %c0_i32_0 = arith.constant 0 : i32
    return %arg0, %c0_i32 : i32, i32
  }
  func.func @transform_1(%arg0: i32) -> (i32, i32) {
    %c0_i32 = arith.constant 0 : i32
    %c0_i32_0 = arith.constant 0 : i32
    %c0_i32_1 = arith.constant 0 : i32
    return %c0_i32, %c0_i32_0 : i32, i32
  }
  func.func @transform_2(%arg0: i32) -> (i32, i32) {
    %c0_i32 = arith.constant 0 : i32
    %c0_i32_0 = arith.constant 0 : i32
    %c0_i32_1 = arith.constant 0 : i32
    return %c0_i32, %c0_i32_0 : i32, i32
  }
  func.func @transform_3(%arg0: i32) -> (i32, i32) {
    %c0_i32 = arith.constant 0 : i32
    %c0_i32_0 = arith.constant 0 : i32
    %c0_i32_1 = arith.constant 0 : i32
    return %c0_i32, %c0_i32_0 : i32, i32
  }
  func.func @transform_4(%arg0: i32) -> (i32, i32) {
    %c0_i32 = arith.constant 0 : i32
    %c0_i32_0 = arith.constant 0 : i32
    %c0_i32_1 = arith.constant 0 : i32
    return %c0_i32, %c0_i32_0 : i32, i32
  }
  func.func @transform_5(%arg0: i32) -> (i32, i32) {
    %c0_i32 = arith.constant 0 : i32
    %c0_i32_0 = arith.constant 0 : i32
    return %arg0, %c0_i32 : i32, i32
  }
}

</mosaic_0001>

<llo_original>
// kernel: spatial_attention_gate.1
$region0: #{spatial_attention_gate.1}
  #allocation0 [shape = 'u32[]', space=smem, size = 0x4, offset = 0x4, fixed_abs, tag = 'smem constant byte address 0x4 - core index']
  #allocation1 [shape = 'u32[144,128]{1,0:T(1,128)}', space=vmem, size = 0x12000, scoped, tag = 'internal scratch']
  %s0 = inlined_call_operand.hbm [shape: f32[512,32], index: 0, kind: input, shape index: {}]
  %s1 = inlined_call_operand.vmem [shape: f32[32,128], index: 1, kind: input, shape index: {}]
  %s2 = inlined_call_operand.vmem [shape: f32[1,128], index: 2, kind: input, shape index: {}]
  %s3 = inlined_call_operand.vmem [shape: f32[128,128], index: 3, kind: input, shape index: {}]
  %s4 = inlined_call_operand.vmem [shape: f32[1,128], index: 4, kind: input, shape index: {}]
  %s5 = inlined_call_operand.vmem [shape: f32[512,128], index: 5, kind: output, shape index: {}]
  %s6 = sld [smem:[#allocation0]]
  $region57: #{spatial_attention_gate.1} parent=0
    _
  %s8 = ssub.s32 1, %s6
  %s9 = scalar_select 0, %s8, %s6
  $region1: #{spatial_attention_gate.1} parent=0
    #allocation2 [shape = 'u8[262144]{0}', space=vmem, size = 0x40000, scoped, tag = 'input window, operand 0']
    #allocation3 [shape = 's32[2]{0}', space=sflag, size = 0x8, scoped, tag = 'scoped memory for spatial_attention_gate.1']
    %10 = vsyncpa [#allocation3], 0
    %s11 = scalar_lea.sflag [#allocation3], 1
    %12 = vsyncpa %s11, 0
    loop: start=0, step=1, limit=4
    $region2: #{spatial_attention_gate.1} parent=1 // loop_pre_header
      _
    $region3: #{spatial_attention_gate.1} parent=1 // loop_header
      %s14 = sphi 0, %s18
      %p15 = scmp.ge.s32.totalorder %s14, 4
      %s24 = sphi 0, %s26
      %s27 = sphi 0, %s24
      %s28 = sphi 0, %s27
      %s44 = sphi 0, %s28
      %s48 = sphi 0, %s48
      %s50 = sphi 0, %s48
      %s51 = sphi 0, %s50
      %s65 = sphi 0, %s51
      %s69 = sphi 0, %s69
      %s71 = sphi 0, %s69
      %s72 = sphi 0, %s71
      %s86 = sphi 0, %s72
      %s90 = sphi 0, %s90
      %s92 = sphi 0, %s90
      %s93 = sphi 0, %s92
      %s107 = sphi 0, %s93
      %s111 = sphi 0, %s111
      %s113 = sphi 0, %s111
      %s114 = sphi 0, %s113
      %s128 = sphi 0, %s114
      %s134 = sphi 0, %s136
      %s137 = sphi 0, %s134
      %s138 = sphi 0, %s137
      %s154 = sphi 0, %s138
    $region4: #{spatial_attention_gate.1} parent=1 // loop_header_branch
      %17 = sbr.rel (%p15) target = $region8
    $region5: #{spatial_attention_gate.1} parent=1 // loop_body
      %s19 = ssub.s32 %s14, 1
      %s20 = ssub.s32 %s14, 2
      %s21 = sadd.s32 %s14, 1
      %s22 = ssub.s32 %s14, %s21
      %p23 = scmp.eq.s32.totalorder %s22, 0
      %s25 = sadd.s32 %s24, 1
      %s26 = scalar_select %p23, %s24, %s25
      %p29 = pneg %p23
      %p30 = scmp.eq.s32.totalorder %s14, 1
      %p31 = por %p29, %p30
      %p32 = scmp.ne.s32.totalorder %s24, %s27
      %p33 = scmp.eq.s32.totalorder %s14, 0
      %p34 = por %p32, %p33
      %p35 = scmp.ne.s32.totalorder %s24, %s27
      %p36 = scmp.eq.s32.totalorder %s19, 1
      %p37 = por %p35, %p36
      %p38 = scmp.ne.s32.totalorder %s27, %s28
      %p39 = scmp.eq.s32.totalorder %s19, 0
      %p40 = por %p38, %p39
      %p41 = scmp.ne.s32.totalorder %s27, %s28
      %p42 = scmp.eq.s32.totalorder %s20, 1
      %p43 = por %p41, %p42
      %p45 = scmp.ne.s32.totalorder %s28, %s44
      %p46 = scmp.eq.s32.totalorder %s20, 0
      %p47 = por %p45, %p46
      %s49 = sadd.s32 %s48, 1
      %p52 = scmp.eq.s32.totalorder %s14, 1
      %p53 = scmp.ne.s32.totalorder %s48, %s50
      %p54 = scmp.eq.s32.totalorder %s14, 0
      %p55 = por %p53, %p54
      %p56 = scmp.ne.s32.totalorder %s48, %s50
      %p57 = scmp.eq.s32.totalorder %s19, 1
      %p58 = por %p56, %p57
      %p59 = scmp.ne.s32.totalorder %s50, %s51
      %p60 = scmp.eq.s32.totalorder %s19, 0
      %p61 = por %p59, %p60
      %p62 = scmp.ne.s32.totalorder %s50, %s51
      %p63 = scmp.eq.s32.totalorder %s20, 1
      %p64 = por %p62, %p63
      %p66 = scmp.ne.s32.totalorder %s51, %s65
      %p67 = scmp.eq.s32.totalorder %s20, 0
      %p68 = por %p66, %p67
      %s70 = sadd.s32 %s69, 1
      %p73 = scmp.eq.s32.totalorder %s14, 1
      %p74 = scmp.ne.s32.totalorder %s69, %s71
      %p75 = scmp.eq.s32.totalorder %s14, 0
      %p76 = por %p74, %p75
      %p77 = scmp.ne.s32.totalorder %s69, %s71
      %p78 = scmp.eq.s32.totalorder %s19, 1
      %p79 = por %p77, %p78
      %p80 = scmp.ne.s32.totalorder %s71, %s72
      %p81 = scmp.eq.s32.totalorder %s19, 0
      %p82 = por %p80, %p81
      %p83 = scmp.ne.s32.totalorder %s71, %s72
      %p84 = scmp.eq.s32.totalorder %s20, 1
      %p85 = por %p83, %p84
      %p87 = scmp.ne.s32.totalorder %s72, %s86
      %p88 = scmp.eq.s32.totalorder %s20, 0
      %p89 = por %p87, %p88
      %s91 = sadd.s32 %s90, 1
      %p94 = scmp.eq.s32.totalorder %s14, 1
      %p95 = scmp.ne.s32.totalorder %s90, %s92
      %p96 = scmp.eq.s32.totalorder %s14, 0
      %p97 = por %p95, %p96
      %p98 = scmp.ne.s32.totalorder %s90, %s92
      %p99 = scmp.eq.s32.totalorder %s19, 1
      %p100 = por %p98, %p99
      %p101 = scmp.ne.s32.totalorder %s92, %s93
      %p102 = scmp.eq.s32.totalorder %s19, 0
      %p103 = por %p101, %p102
      %p104 = scmp.ne.s32.totalorder %s92, %s93
      %p105 = scmp.eq.s32.totalorder %s20, 1
      %p106 = por %p104, %p105
      %p108 = scmp.ne.s32.totalorder %s93, %s107
      %p109 = scmp.eq.s32.totalorder %s20, 0
      %p110 = por %p108, %p109
      %s112 = sadd.s32 %s111, 1
      %p115 = scmp.eq.s32.totalorder %s14, 1
      %p116 = scmp.ne.s32.totalorder %s111, %s113
      %p117 = scmp.eq.s32.totalorder %s14, 0
      %p118 = por %p116, %p117
      %p119 = scmp.ne.s32.totalorder %s111, %s113
      %p120 = scmp.eq.s32.totalorder %s19, 1
      %p121 = por %p119, %p120
      %p122 = scmp.ne.s32.totalorder %s113, %s114
      %p123 = scmp.eq.s32.totalorder %s19, 0
      %p124 = por %p122, %p123
      %p125 = scmp.ne.s32.totalorder %s113, %s114
      %p126 = scmp.eq.s32.totalorder %s20, 1
      %p127 = por %p125, %p126
      %p129 = scmp.ne.s32.totalorder %s114, %s128
      %p130 = scmp.eq.s32.totalorder %s20, 0
      %p131 = por %p129, %p130
      %s132 = ssub.s32 %s14, %s21
      %p133 = scmp.eq.s32.totalorder %s132, 0
      %s135 = sadd.s32 %s134, 1
      %s136 = scalar_select %p133, %s134, %s135
      %p139 = pneg %p133
      %p140 = scmp.eq.s32.totalorder %s14, 1
      %p141 = por %p139, %p140
      %p142 = scmp.ne.s32.totalorder %s134, %s137
      %p143 = scmp.eq.s32.totalorder %s14, 0
      %p144 = por %p142, %p143
      %p145 = scmp.ne.s32.totalorder %s134, %s137
      %p146 = scmp.eq.s32.totalorder %s19, 1
      %p147 = por %p145, %p146
      %p148 = scmp.ne.s32.totalorder %s137, %s138
      %p149 = scmp.eq.s32.totalorder %s19, 0
      %p150 = por %p148, %p149
      %p151 = scmp.ne.s32.totalorder %s137, %s138
      %p152 = scmp.eq.s32.totalorder %s20, 1
      %p153 = por %p151, %p152
      %p155 = scmp.ne.s32.totalorder %s138, %s154
      %p156 = scmp.eq.s32.totalorder %s20, 0
      %p157 = por %p155, %p156
      %p158 = scmp.le.s32.totalorder 1, %s14
      %p159 = scmp.lt.s32.totalorder %s14, 3
      %p160 = pnand %p158, %p159
      %p161 = pneg %p160
      // Predicated region
      $region9: #{spatial_attention_gate.1} parent=5 // pred_check
        _
      $region10: #{spatial_attention_gate.1} parent=5 // pred_check_branch
        %163 = sbr.rel (%p160) target = $region12
      $region11: #{spatial_attention_gate.1} parent=5 // pred_region
        %s164 = ssub.s32 %s14, 1
        // Predicated region
        $region13: #{spatial_attention_gate.1} parent=11 // pred_check
          %p165 = pneg %p61
        $region14: #{spatial_attention_gate.1} parent=11 // pred_check_branch
          %167 = sbr.rel (%p165) target = $region16
        $region15: #{spatial_attention_gate.1} parent=11 // pred_region
          _
        $region16: #{spatial_attention_gate.1} parent=11 // pred_fallthru
          _
        // Predicated region
        $region17: #{spatial_attention_gate.1} parent=11 // pred_check
          %p168 = pneg %p82
        $region18: #{spatial_attention_gate.1} parent=11 // pred_check_branch
          %170 = sbr.rel (%p168) target = $region20
        $region19: #{spatial_attention_gate.1} parent=11 // pred_region
          _
        $region20: #{spatial_attention_gate.1} parent=11 // pred_fallthru
          _
        // Predicated region
        $region21: #{spatial_attention_gate.1} parent=11 // pred_check
          %p171 = pneg %p103
        $region22: #{spatial_attention_gate.1} parent=11 // pred_check_branch
          %173 = sbr.rel (%p171) target = $region24
        $region23: #{spatial_attention_gate.1} parent=11 // pred_region
          _
        $region24: #{spatial_attention_gate.1} parent=11 // pred_fallthru
          _
        // Predicated region
        $region25: #{spatial_attention_gate.1} parent=11 // pred_check
          %p174 = pneg %p124
        $region26: #{spatial_attention_gate.1} parent=11 // pred_check_branch
          %176 = sbr.rel (%p174) target = $region28
        $region27: #{spatial_attention_gate.1} parent=11 // pred_region
          _
        $region28: #{spatial_attention_gate.1} parent=11 // pred_fallthru
          _
      $region12: #{spatial_attention_gate.1} parent=5 // pred_fallthru
        _
      %p177 = scmp.lt.s32.totalorder %s14, 2
      // Predicated region
      $region29: #{spatial_attention_gate.1} parent=5 // pred_check
        %p178 = pneg %p177
      $region30: #{spatial_attention_gate.1} parent=5 // pred_check_branch
        %180 = sbr.rel (%p178) target = $region32
      $region31: #{spatial_attention_gate.1} parent=5 // pred_region
        // Predicated region
        $region33: #{spatial_attention_gate.1} parent=31 // pred_check
          %p181 = pneg %p34
        $region34: #{spatial_attention_gate.1} parent=31 // pred_check_branch
          %183 = sbr.rel (%p181) target = $region36
        $region35: #{spatial_attention_gate.1} parent=31 // pred_region
          %s184 = sand.u32 %s24, 1
          %s185 = scalar_lea.sflag [#allocation3], %s184
          %s186 = sand.u32 %s24, 1
          %s187 = smul.addr %s186, 256
          %s188 = scalar_lea.vmem [#allocation2], %s187
          %s189 = smul.u32 32, %s14
          %s191 = ssub.s32 4096, 4096
          %192 = vsyncadd %s185, %s191
          %s193 = smul.addr %s189, 128
          %s194 = scalar_lea.hbm %s0, %s193
          %s195 = sshll.u32 %s188, 4
          %s196 = int_to_ptr.vmem [resolvable:$true] %s195
          %201 = dma.hbm_to_vmem [thread:$0]  %s194, 4096, %s196, %s185, 128, 128, 8
        $region36: #{spatial_attention_gate.1} parent=31 // pred_fallthru
          _
      $region32: #{spatial_attention_gate.1} parent=5 // pred_fallthru
        _
      %p202 = scmp.le.s32.totalorder 1, %s14
      %p203 = scmp.lt.s32.totalorder %s14, 3
      %p204 = pnand %p202, %p203
      %p205 = pneg %p204
      // Predicated region
      $region37: #{spatial_attention_gate.1} parent=5 // pred_check
        _
      $region38: #{spatial_attention_gate.1} parent=5 // pred_check_branch
        %207 = sbr.rel (%p204) target = $region40
      $region39: #{spatial_attention_gate.1} parent=5 // pred_region
        %s208 = ssub.s32 %s14, 1
        %s209 = sand.u32 %s27, 1
        %s210 = scalar_lea.sflag [#allocation3], %s209
        %s211 = sand.u32 %s27, 1
        %s212 = smul.addr %s211, 256
        %s213 = scalar_lea.vmem [#allocation2], %s212
        // Predicated region
        $region41: #{spatial_attention_gate.1} parent=39 // pred_check
          %p214 = pneg %p40
        $region42: #{spatial_attention_gate.1} parent=39 // pred_check_branch
          %216 = sbr.rel (%p214) target = $region44
        $region43: #{spatial_attention_gate.1} parent=39 // pred_region
          %217 = dma.done %s210, 4096
        $region44: #{spatial_attention_gate.1} parent=39 // pred_fallthru
          _
        %s218 = sand.u32 %s27, 1
        %s219 = scalar_lea.sflag [#allocation3], %s218
        %s220 = sand.u32 %s27, 1
        %s221 = smul.addr %s220, 256
        %s222 = scalar_lea.vmem [#allocation2], %s221
        %p223 = pneg %p40
        %p224 = pneg %p37
        %p225 = pneg %p61
        %p226 = pneg %p58
        %p227 = pneg %p82
        %p228 = pneg %p79
        %p229 = pneg %p103
        %p230 = pneg %p100
        %p231 = pneg %p124
        %p232 = pneg %p121
        %p233 = pneg %p150
        %p234 = pneg %p147
        %s235 = smul.u32 32, %s19
        %p236 = scmp.lt.s32.totalorder %s235, 63
        %s237 = scalar_select %p236, %s235, 63
        %s238 = smul.addr %s237, 8
        %s239 = scalar_lea.vmem %s5, %s238
        %s240 = smul.u32 32, %s19
        %s241 = smul.u32 32, %s19
        %p242 = scmp.lt.s32.totalorder %s241, 63
        %s243 = scalar_select %p242, %s241, 63
        %s244 = smul.addr %s243, 8
        %s245 = scalar_lea.vmem %s5, %s244
        %s246 = smul.u32 32, %s19
        %v247 = vld [vmem:[%s213] sm:$0xff]
        %v248 = vld [vmem:[%s213 + $0x8] sm:$0xff]
        %v249 = vld [vmem:[%s213 + $0x10] sm:$0xff]
        %v250 = vld [vmem:[%s213 + $0x18] sm:$0xff]
        %v251 = vld [vmem:[%s213 + $0x20] sm:$0xff]
        %v252 = vld [vmem:[%s213 + $0x28] sm:$0xff]
        %v253 = vld [vmem:[%s213 + $0x30] sm:$0xff]
        %v254 = vld [vmem:[%s213 + $0x38] sm:$0xff]
        %v255 = vld [vmem:[%s213 + $0x40] sm:$0xff]
        %v256 = vld [vmem:[%s213 + $0x48] sm:$0xff]
        %v257 = vld [vmem:[%s213 + $0x50] sm:$0xff]
        %v258 = vld [vmem:[%s213 + $0x58] sm:$0xff]
        %v259 = vld [vmem:[%s213 + $0x60] sm:$0xff]
        %v260 = vld [vmem:[%s213 + $0x68] sm:$0xff]
        %v261 = vld [vmem:[%s213 + $0x70] sm:$0xff]
        %v262 = vld [vmem:[%s213 + $0x78] sm:$0xff]
        %v263 = vld [vmem:[%s213 + $0x80] sm:$0xff]
        %v264 = vld [vmem:[%s213 + $0x88] sm:$0xff]
        %v265 = vld [vmem:[%s213 + $0x90] sm:$0xff]
        %v266 = vld [vmem:[%s213 + $0x98] sm:$0xff]
        %v267 = vld [vmem:[%s213 + $0xa0] sm:$0xff]
        %v268 = vld [vmem:[%s213 + $0xa8] sm:$0xff]
        %v269 = vld [vmem:[%s213 + $0xb0] sm:$0xff]
        %v270 = vld [vmem:[%s213 + $0xb8] sm:$0xff]
        %v271 = vld [vmem:[%s213 + $0xc0] sm:$0xff]
        %v272 = vld [vmem:[%s213 + $0xc8] sm:$0xff]
        %v273 = vld [vmem:[%s213 + $0xd0] sm:$0xff]
        %v274 = vld [vmem:[%s213 + $0xd8] sm:$0xff]
        %v275 = vld [vmem:[%s213 + $0xe0] sm:$0xff]
        %v276 = vld [vmem:[%s213 + $0xe8] sm:$0xff]
        %v277 = vld [vmem:[%s213 + $0xf0] sm:$0xff]
        %v278 = vld [vmem:[%s213 + $0xf8] sm:$0xff]
        %v279 = vld [vmem:[%s1] sm:$0xff]
        %v280 = vld [vmem:[%s1 + $0x8] sm:$0xff]
        %v281 = vld [vmem:[%s1 + $0x10] sm:$0xff]
        %v282 = vld [vmem:[%s1 + $0x18] sm:$0xff]
        %v283 = vld [vmem:[%s2] sm:$0x1]
        %v285 = vlaneseq
        %v286 = vshrl.u32 %v285, 7
        %v287 = vsub.s32 0, %v286
        %v288 = vrot.slane %v283, %v287
        %vm290 = vcmask 261120
        %v292 = vsel %vm290, %v247, 0
        %v295 = vsel %vm290, %v248, 0
        %v298 = vsel %vm290, %v249, 0
        %v301 = vsel %vm290, %v250, 0
        %v304 = vsel %vm290, %v251, 0
        %v307 = vsel %vm290, %v252, 0
        %v310 = vsel %vm290, %v253, 0
        %v313 = vsel %vm290, %v254, 0
        %v316 = vsel %vm290, %v255, 0
        %v319 = vsel %vm290, %v256, 0
        %v322 = vsel %vm290, %v257, 0
        %v325 = vsel %vm290, %v258, 0
        %v328 = vsel %vm290, %v259, 0
        %v331 = vsel %vm290, %v260, 0
        %v334 = vsel %vm290, %v261, 0
        %v337 = vsel %vm290, %v262, 0
        %v340 = vsel %vm290, %v263, 0
        %v343 = vsel %vm290, %v264, 0
        %v346 = vsel %vm290, %v265, 0
        %v349 = vsel %vm290, %v266, 0
        %v352 = vsel %vm290, %v267, 0
        %v355 = vsel %vm290, %v268, 0
        %v358 = vsel %vm290, %v269, 0
        %v361 = vsel %vm290, %v270, 0
        %v364 = vsel %vm290, %v271, 0
        %v367 = vsel %vm290, %v272, 0
        %v370 = vsel %vm290, %v273, 0
        %v373 = vsel %vm290, %v274, 0
        %v376 = vsel %vm290, %v275, 0
        %v379 = vsel %vm290, %v276, 0
        %v382 = vsel %vm290, %v277, 0
        %v385 = vsel %vm290, %v278, 0
        %387 = vmatprep.subr.mxu0 0.0
        %388 = vmatpush1.msra.mxu0 %v279
        %389 = vmatprep.subr.mxu0 0.0
        %390 = vmatpush1.msra.mxu0 %v280
        %391 = vmatprep.subr.mxu0 0.0
        %392 = vmatpush1.msra.mxu0 %v281
        %393 = vmatprep.subr.mxu0 0.0
        %394 = vmatpush1.msra.mxu0 %v282
        %395 = vmatprep.subr.mxu0 0.0
        %396 = vmatpush1.msra.mxu0 0.0
        %397 = vmatprep.subr.mxu0 0.0
        %398 = vmatpush1.msra.mxu0 0.0
        %399 = vmatprep.subr.mxu0 0.0
        %400 = vmatpush1.msra.mxu0 0.0
        %401 = vmatprep.subr.mxu0 0.0
        %402 = vmatpush1.msra.mxu0 0.0
        %403 = vmatprep.subr.mxu0 0.0
        %404 = vmatpush1.msra.mxu0 0.0
        %405 = vmatprep.subr.mxu0 0.0
        %406 = vmatpush1.msra.mxu0 0.0
        %407 = vmatprep.subr.mxu0 0.0
        %408 = vmatpush1.msra.mxu0 0.0
        %409 = vmatprep.subr.mxu0 0.0
        %410 = vmatpush1.msra.mxu0 0.0
        %411 = vmatprep.subr.mxu0 0.0
        %412 = vmatpush1.msra.mxu0 0.0
        %413 = vmatprep.subr.mxu0 0.0
        %414 = vmatpush1.msra.mxu0 0.0
        %415 = vmatprep.subr.mxu0 0.0
        %416 = vmatpush1.msra.mxu0 0.0
        %417 = vmatprep.subr.mxu0 0.0
        %418 = vmatpush1.msra.mxu0 0.0
        %419 = vmatprep.subr.mxu0 0.0
        %420 = vmatpush1.msra.mxu0 0.0
        %421 = vmatprep.subr.mxu0 0.0
        %422 = vmatpush1.msra.mxu0 0.0
        %423 = vmatprep.subr.mxu0 0.0
        %424 = vmatpush1.msra.mxu0 0.0
        %425 = vmatprep.subr.mxu0 0.0
        %426 = vmatpush1.msra.mxu0 0.0
        %427 = vmatprep.subr.mxu0 0.0
        %428 = vmatpush1.msra.mxu0 0.0
        %429 = vmatprep.subr.mxu0 0.0
        %430 = vmatpush1.msra.mxu0 0.0
        %431 = vmatprep.subr.mxu0 0.0
        %432 = vmatpush1.msra.mxu0 0.0
        %433 = vmatprep.subr.mxu0 0.0
        %434 = vmatpush1.msra.mxu0 0.0
        %435 = vmatprep.subr.mxu0 0.0
        %436 = vmatpush1.msra.mxu0 0.0
        %437 = vmatprep.subr.mxu0 0.0
        %438 = vmatpush1.msra.mxu0 0.0
        %439 = vmatprep.subr.mxu0 0.0
        %440 = vmatpush1.msra.mxu0 0.0
        %441 = vmatprep.subr.mxu0 0.0
        %442 = vmatpush1.msra.mxu0 0.0
        %443 = vmatprep.subr.mxu0 0.0
        %444 = vmatpush1.msra.mxu0 0.0
        %445 = vmatprep.subr.mxu0 0.0
        %446 = vmatpush1.msra.mxu0 0.0
        %447 = vmatprep.subr.mxu0 0.0
        %448 = vmatpush1.msra.mxu0 0.0
        %449 = vmatprep.subr.mxu0 0.0
        %450 = vmatpush1.msra.mxu0 0.0
        %451 = vmatprep.mubr.f32.mxu0 0.0
        %452 = vmatmul.mubr.f32.gmra.mrb[0].mxu0 %v292
        %v453 = vpop.f32.mrb[0].mxu0
        %v454 = vadd.f32 %v288, %v453
        %v455 = vpop.f32.mrb[0].mxu0
        %456 = vmatprep.mubr.f32.mxu0 0.0
        %457 = vmatmul.mubr.f32.gmra.mrb[0].mxu0 %v295
        %v458 = vpop.f32.mrb[0].mxu0
        %v459 = vadd.f32 %v288, %v458
        %v460 = vpop.f32.mrb[0].mxu0
        %461 = vmatprep.mubr.f32.mxu0 0.0
        %462 = vmatmul.mubr.f32.gmra.mrb[0].mxu0 %v298
        %v463 = vpop.f32.mrb[0].mxu0
        %v464 = vadd.f32 %v288, %v463
        %v465 = vpop.f32.mrb[0].mxu0
        %466 = vmatprep.mubr.f32.mxu0 0.0
        %467 = vmatmul.mubr.f32.gmra.mrb[0].mxu0 %v301
        %v468 = vpop.f32.mrb[0].mxu0
        %v469 = vadd.f32 %v288, %v468
        %v470 = vpop.f32.mrb[0].mxu0
        %471 = vmatprep.mubr.f32.mxu0 0.0
        %472 = vmatmul.mubr.f32.gmra.mrb[0].mxu0 %v304
        %v473 = vpop.f32.mrb[0].mxu0
        %v474 = vadd.f32 %v288, %v473
        %v475 = vpop.f32.mrb[0].mxu0
        %476 = vmatprep.mubr.f32.mxu0 0.0
        %477 = vmatmul.mubr.f32.gmra.mrb[0].mxu0 %v307
        %v478 = vpop.f32.mrb[0].mxu0
        %v479 = vadd.f32 %v288, %v478
        %v480 = vpop.f32.mrb[0].mxu0
        %481 = vmatprep.mubr.f32.mxu0 0.0
        %482 = vmatmul.mubr.f32.gmra.mrb[0].mxu0 %v310
        %v483 = vpop.f32.mrb[0].mxu0
        %v484 = vadd.f32 %v288, %v483
        %v485 = vpop.f32.mrb[0].mxu0
        %486 = vmatprep.mubr.f32.mxu0 0.0
        %487 = vmatmul.mubr.f32.gmra.mrb[0].mxu0 %v313
        %v488 = vpop.f32.mrb[0].mxu0
        %v489 = vadd.f32 %v288, %v488
        %v490 = vpop.f32.mrb[0].mxu0
        %491 = vmatprep.mubr.f32.mxu0 0.0
        %492 = vmatmul.mubr.f32.gmra.mrb[0].mxu0 %v316
        %v493 = vpop.f32.mrb[0].mxu0
        %v494 = vadd.f32 %v288, %v493
        %v495 = vpop.f32.mrb[0].mxu0
        %496 = vmatprep.mubr.f32.mxu0 0.0
        %497 = vmatmul.mubr.f32.gmra.mrb[0].mxu0 %v319
        %v498 = vpop.f32.mrb[0].mxu0
        %v499 = vadd.f32 %v288, %v498
        %v500 = vpop.f32.mrb[0].mxu0
        %501 = vmatprep.mubr.f32.mxu0 0.0
        %502 = vmatmul.mubr.f32.gmra.mrb[0].mxu0 %v322
        %v503 = vpop.f32.mrb[0].mxu0
        %v504 = vadd.f32 %v288, %v503
        %v505 = vpop.f32.mrb[0].mxu0
        %506 = vmatprep.mubr.f32.mxu0 0.0
        %507 = vmatmul.mubr.f32.gmra.mrb[0].mxu0 %v325
        %v508 = vpop.f32.mrb[0].mxu0
        %v509 = vadd.f32 %v288, %v508
        %v510 = vpop.f32.mrb[0].mxu0
        %511 = vmatprep.mubr.f32.mxu0 0.0
        %512 = vmatmul.mubr.f32.gmra.mrb[0].mxu0 %v328
        %v513 = vpop.f32.mrb[0].mxu0
        %v514 = vadd.f32 %v288, %v513
        %v515 = vpop.f32.mrb[0].mxu0
        %516 = vmatprep.mubr.f32.mxu0 0.0
        %517 = vmatmul.mubr.f32.gmra.mrb[0].mxu0 %v331
        %v518 = vpop.f32.mrb[0].mxu0
        %v519 = vadd.f32 %v288, %v518
        %v520 = vpop.f32.mrb[0].mxu0
        %521 = vmatprep.mubr.f32.mxu0 0.0
        %522 = vmatmul.mubr.f32.gmra.mrb[0].mxu0 %v334
        %v523 = vpop.f32.mrb[0].mxu0
        %v524 = vadd.f32 %v288, %v523
        %v525 = vpop.f32.mrb[0].mxu0
        %526 = vmatprep.mubr.f32.mxu0 0.0
        %527 = vmatmul.mubr.f32.gmra.mrb[0].mxu0 %v337
        %v528 = vpop.f32.mrb[0].mxu0
        %v529 = vadd.f32 %v288, %v528
        %v530 = vpop.f32.mrb[0].mxu0
        %531 = vmatprep.mubr.f32.mxu0 0.0
        %532 = vmatmul.mubr.f32.gmra.mrb[0].mxu0 %v340
        %v533 = vpop.f32.mrb[0].mxu0
        %v534 = vadd.f32 %v288, %v533
        %v535 = vpop.f32.mrb[0].mxu0
        %536 = vmatprep.mubr.f32.mxu0 0.0
        %537 = vmatmul.mubr.f32.gmra.mrb[0].mxu0 %v343
        %v538 = vpop.f32.mrb[0].mxu0
        %v539 = vadd.f32 %v288, %v538
        %v540 = vpop.f32.mrb[0].mxu0
        %541 = vmatprep.mubr.f32.mxu0 0.0
        %542 = vmatmul.mubr.f32.gmra.mrb[0].mxu0 %v346
        %v543 = vpop.f32.mrb[0].mxu0
        %v544 = vadd.f32 %v288, %v543
        %v545 = vpop.f32.mrb[0].mxu0
        %546 = vmatprep.mubr.f32.mxu0 0.0
        %547 = vmatmul.mubr.f32.gmra.mrb[0].mxu0 %v349
        %v548 = vpop.f32.mrb[0].mxu0
        %v549 = vadd.f32 %v288, %v548
        %v550 = vpop.f32.mrb[0].mxu0
        %551 = vmatprep.mubr.f32.mxu0 0.0
        %552 = vmatmul.mubr.f32.gmra.mrb[0].mxu0 %v352
        %v553 = vpop.f32.mrb[0].mxu0
        %v554 = vadd.f32 %v288, %v553
        %v555 = vpop.f32.mrb[0].mxu0
        %556 = vmatprep.mubr.f32.mxu0 0.0
        %557 = vmatmul.mubr.f32.gmra.mrb[0].mxu0 %v355
        %v558 = vpop.f32.mrb[0].mxu0
        %v559 = vadd.f32 %v288, %v558
        %v560 = vpop.f32.mrb[0].mxu0
        %561 = vmatprep.mubr.f32.mxu0 0.0
        %562 = vmatmul.mubr.f32.gmra.mrb[0].mxu0 %v358
        %v563 = vpop.f32.mrb[0].mxu0
        %v564 = vadd.f32 %v288, %v563
        %v565 = vpop.f32.mrb[0].mxu0
        %566 = vmatprep.mubr.f32.mxu0 0.0
        %567 = vmatmul.mubr.f32.gmra.mrb[0].mxu0 %v361
        %v568 = vpop.f32.mrb[0].mxu0
        %v569 = vadd.f32 %v288, %v568
        %v570 = vpop.f32.mrb[0].mxu0
        %571 = vmatprep.mubr.f32.mxu0 0.0
        %572 = vmatmul.mubr.f32.gmra.mrb[0].mxu0 %v364
        %v573 = vpop.f32.mrb[0].mxu0
        %v574 = vadd.f32 %v288, %v573
        %v575 = vpop.f32.mrb[0].mxu0
        %576 = vmatprep.mubr.f32.mxu0 0.0
        %577 = vmatmul.mubr.f32.gmra.mrb[0].mxu0 %v367
        %v578 = vpop.f32.mrb[0].mxu0
        %v579 = vadd.f32 %v288, %v578
        %v580 = vpop.f32.mrb[0].mxu0
        %581 = vmatprep.mubr.f32.mxu0 0.0
        %582 = vmatmul.mubr.f32.gmra.mrb[0].mxu0 %v370
        %v583 = vpop.f32.mrb[0].mxu0
        %v584 = vadd.f32 %v288, %v583
        %v585 = vpop.f32.mrb[0].mxu0
        %586 = vmatprep.mubr.f32.mxu0 0.0
        %587 = vmatmul.mubr.f32.gmra.mrb[0].mxu0 %v373
        %v588 = vpop.f32.mrb[0].mxu0
        %v589 = vadd.f32 %v288, %v588
        %v590 = vpop.f32.mrb[0].mxu0
        %591 = vmatprep.mubr.f32.mxu0 0.0
        %592 = vmatmul.mubr.f32.gmra.mrb[0].mxu0 %v376
        %v593 = vpop.f32.mrb[0].mxu0
        %v594 = vadd.f32 %v288, %v593
        %v595 = vpop.f32.mrb[0].mxu0
        %596 = vmatprep.mubr.f32.mxu0 0.0
        %597 = vmatmul.mubr.f32.gmra.mrb[0].mxu0 %v379
        %v598 = vpop.f32.mrb[0].mxu0
        %v599 = vadd.f32 %v288, %v598
        %v600 = vpop.f32.mrb[0].mxu0
        %601 = vmatprep.mubr.f32.mxu0 0.0
        %602 = vmatmul.mubr.f32.gmra.mrb[0].mxu0 %v382
        %v603 = vpop.f32.mrb[0].mxu0
        %v604 = vadd.f32 %v288, %v603
        %v605 = vpop.f32.mrb[0].mxu0
        %606 = vmatprep.mubr.f32.mxu0 0.0
        %607 = vmatmul.mubr.f32.gmra.mrb[0].mxu0 %v385
        %v608 = vpop.f32.mrb[0].mxu0
        %v609 = vadd.f32 %v288, %v608
        %v610 = vpop.f32.mrb[0].mxu0
        %611 = vdwg.mxu0
        %v612 = vmax.f32 %v454, 0.0
        %v613 = vmax.f32 %v459, 0.0
        %v614 = vmax.f32 %v464, 0.0
        %v615 = vmax.f32 %v469, 0.0
        %v616 = vmax.f32 %v474, 0.0
        %v617 = vmax.f32 %v479, 0.0
        %v618 = vmax.f32 %v484, 0.0
        %v619 = vmax.f32 %v489, 0.0
        %v620 = vmax.f32 %v494, 0.0
        %v621 = vmax.f32 %v499, 0.0
        %v622 = vmax.f32 %v504, 0.0
        %v623 = vmax.f32 %v509, 0.0
        %v624 = vmax.f32 %v514, 0.0
        %v625 = vmax.f32 %v519, 0.0
        %v626 = vmax.f32 %v524, 0.0
        %v627 = vmax.f32 %v529, 0.0
        %v628 = vmax.f32 %v534, 0.0
        %v629 = vmax.f32 %v539, 0.0
        %v630 = vmax.f32 %v544, 0.0
        %v631 = vmax.f32 %v549, 0.0
        %v632 = vmax.f32 %v554, 0.0
        %v633 = vmax.f32 %v559, 0.0
        %v634 = vmax.f32 %v564, 0.0
        %v635 = vmax.f32 %v569, 0.0
        %v636 = vmax.f32 %v574, 0.0
        %v637 = vmax.f32 %v579, 0.0
        %v638 = vmax.f32 %v584, 0.0
        %v639 = vmax.f32 %v589, 0.0
        %v640 = vmax.f32 %v594, 0.0
        %v641 = vmax.f32 %v599, 0.0
        %v642 = vmax.f32 %v604, 0.0
        %v643 = vmax.f32 %v609, 0.0
        %v644 = vld [vmem:[%s3] sm:$0xff]
        %v645 = vld [vmem:[%s3 + $0x8] sm:$0xff]
        %v646 = vld [vmem:[%s3 + $0x10] sm:$0xff]
        %v647 = vld [vmem:[%s3 + $0x18] sm:$0xff]
        %v648 = vld [vmem:[%s3 + $0x20] sm:$0xff]
        %v649 = vld [vmem:[%s3 + $0x28] sm:$0xff]
        %v650 = vld [vmem:[%s3 + $0x30] sm:$0xff]
        %v651 = vld [vmem:[%s3 + $0x38] sm:$0xff]
        %v652 = vld [vmem:[%s3 + $0x40] sm:$0xff]
        %v653 = vld [vmem:[%s3 + $0x48] sm:$0xff]
        %v654 = vld [vmem:[%s3 + $0x50] sm:$0xff]
        %v655 = vld [vmem:[%s3 + $0x58] sm:$0xff]
        %v656 = vld [vmem:[%s3 + $0x60] sm:$0xff]
        %v657 = vld [vmem:[%s3 + $0x68] sm:$0xff]
        %v658 = vld [vmem:[%s3 + $0x70] sm:$0xff]
        %v659 = vld [vmem:[%s3 + $0x78] sm:$0xff]
        %v660 = vld [vmem:[%s4] sm:$0x1]
        %v662 = vlaneseq
        %v663 = vshrl.u32 %v662, 7
        %v664 = vsub.s32 0, %v663
        %v665 = vrot.slane %v660, %v664
        %667 = vmatprep.subr.mxu0 0.0
        %668 = vmatpush1.msra.mxu0 %v644
        %669 = vmatprep.subr.mxu0 0.0
        %670 = vmatpush1.msra.mxu0 %v645
        %671 = vmatprep.subr.mxu0 0.0
        %672 = vmatpush1.msra.mxu0 %v646
        %673 = vmatprep.subr.mxu0 0.0
        %674 = vmatpush1.msra.mxu0 %v647
        %675 = vmatprep.subr.mxu0 0.0
        %676 = vmatpush1.msra.mxu0 %v648
        %677 = vmatprep.subr.mxu0 0.0
        %678 = vmatpush1.msra.mxu0 %v649
        %679 = vmatprep.subr.mxu0 0.0
        %680 = vmatpush1.msra.mxu0 %v650
        %681 = vmatprep.subr.mxu0 0.0
        %682 = vmatpush1.msra.mxu0 %v651
        %683 = vmatprep.subr.mxu0 0.0
        %684 = vmatpush1.msra.mxu0 %v652
        %685 = vmatprep.subr.mxu0 0.0
        %686 = vmatpush1.msra.mxu0 %v653
        %687 = vmatprep.subr.mxu0 0.0
        %688 = vmatpush1.msra.mxu0 %v654
        %689 = vmatprep.subr.mxu0 0.0
        %690 = vmatpush1.msra.mxu0 %v655
        %691 = vmatprep.subr.mxu0 0.0
        %692 = vmatpush1.msra.mxu0 %v656
        %693 = vmatprep.subr.mxu0 0.0
        %694 = vmatpush1.msra.mxu0 %v657
        %695 = vmatprep.subr.mxu0 0.0
        %696 = vmatpush1.msra.mxu0 %v658
        %697 = vmatprep.subr.mxu0 0.0
        %698 = vmatpush1.msra.mxu0 %v659
        %699 = vmatprep.subr.mxu0 0.0
        %700 = vmatpush1.msra.mxu0 0.0
        %701 = vmatprep.subr.mxu0 0.0
        %702 = vmatpush1.msra.mxu0 0.0
        %703 = vmatprep.subr.mxu0 0.0
        %704 = vmatpush1.msra.mxu0 0.0
        %705 = vmatprep.subr.mxu0 0.0
        %706 = vmatpush1.msra.mxu0 0.0
        %707 = vmatprep.subr.mxu0 0.0
        %708 = vmatpush1.msra.mxu0 0.0
        %709 = vmatprep.subr.mxu0 0.0
        %710 = vmatpush1.msra.mxu0 0.0
        %711 = vmatprep.subr.mxu0 0.0
        %712 = vmatpush1.msra.mxu0 0.0
        %713 = vmatprep.subr.mxu0 0.0
        %714 = vmatpush1.msra.mxu0 0.0
        %715 = vmatprep.subr.mxu0 0.0
        %716 = vmatpush1.msra.mxu0 0.0
        %717 = vmatprep.subr.mxu0 0.0
        %718 = vmatpush1.msra.mxu0 0.0
        %719 = vmatprep.subr.mxu0 0.0
        %720 = vmatpush1.msra.mxu0 0.0
        %721 = vmatprep.subr.mxu0 0.0
        %722 = vmatpush1.msra.mxu0 0.0
        %723 = vmatprep.subr.mxu0 0.0
        %724 = vmatpush1.msra.mxu0 0.0
        %725 = vmatprep.subr.mxu0 0.0
        %726 = vmatpush1.msra.mxu0 0.0
        %727 = vmatprep.subr.mxu0 0.0
        %728 = vmatpush1.msra.mxu0 0.0
        %729 = vmatprep.subr.mxu0 0.0
        %730 = vmatpush1.msra.mxu0 0.0
        %731 = vmatprep.mubr.f32.mxu0 0.0
        %732 = vmatmul.mubr.f32.gmra.mrb[0].mxu0 %v612
        %v733 = vpop.f32.mrb[0].mxu0
        %v734 = vadd.f32 %v665, %v733
        %v735 = vpop.f32.mrb[0].mxu0
        %736 = vmatprep.mubr.f32.mxu0 0.0
        %737 = vmatmul.mubr.f32.gmra.mrb[0].mxu0 %v613
        %v738 = vpop.f32.mrb[0].mxu0
        %v739 = vadd.f32 %v665, %v738
        %v740 = vpop.f32.mrb[0].mxu0
        %741 = vmatprep.mubr.f32.mxu0 0.0
        %742 = vmatmul.mubr.f32.gmra.mrb[0].mxu0 %v614
        %v743 = vpop.f32.mrb[0].mxu0
        %v744 = vadd.f32 %v665, %v743
        %v745 = vpop.f32.mrb[0].mxu0
        %746 = vmatprep.mubr.f32.mxu0 0.0
        %747 = vmatmul.mubr.f32.gmra.mrb[0].mxu0 %v615
        %v748 = vpop.f32.mrb[0].mxu0
        %v749 = vadd.f32 %v665, %v748
        %v750 = vpop.f32.mrb[0].mxu0
        %751 = vmatprep.mubr.f32.mxu0 0.0
        %752 = vmatmul.mubr.f32.gmra.mrb[0].mxu0 %v616
        %v753 = vpop.f32.mrb[0].mxu0
        %v754 = vadd.f32 %v665, %v753
        %v755 = vpop.f32.mrb[0].mxu0
        %756 = vmatprep.mubr.f32.mxu0 0.0
        %757 = vmatmul.mubr.f32.gmra.mrb[0].mxu0 %v617
        %v758 = vpop.f32.mrb[0].mxu0
        %v759 = vadd.f32 %v665, %v758
        %v760 = vpop.f32.mrb[0].mxu0
        %761 = vmatprep.mubr.f32.mxu0 0.0
        %762 = vmatmul.mubr.f32.gmra.mrb[0].mxu0 %v618
        %v763 = vpop.f32.mrb[0].mxu0
        %v764 = vadd.f32 %v665, %v763
        %v765 = vpop.f32.mrb[0].mxu0
        %766 = vmatprep.mubr.f32.mxu0 0.0
        %767 = vmatmul.mubr.f32.gmra.mrb[0].mxu0 %v619
        %v768 = vpop.f32.mrb[0].mxu0
        %v769 = vadd.f32 %v665, %v768
        %v770 = vpop.f32.mrb[0].mxu0
        %771 = vmatprep.mubr.f32.mxu0 0.0
        %772 = vmatmul.mubr.f32.gmra.mrb[0].mxu0 %v620
        %v773 = vpop.f32.mrb[0].mxu0
        %v774 = vadd.f32 %v665, %v773
        %v775 = vpop.f32.mrb[0].mxu0
        %776 = vmatprep.mubr.f32.mxu0 0.0
        %777 = vmatmul.mubr.f32.gmra.mrb[0].mxu0 %v621
        %v778 = vpop.f32.mrb[0].mxu0
        %v779 = vadd.f32 %v665, %v778
        %v780 = vpop.f32.mrb[0].mxu0
        %781 = vmatprep.mubr.f32.mxu0 0.0
        %782 = vmatmul.mubr.f32.gmra.mrb[0].mxu0 %v622
        %v783 = vpop.f32.mrb[0].mxu0
        %v784 = vadd.f32 %v665, %v783
        %v785 = vpop.f32.mrb[0].mxu0
        %786 = vmatprep.mubr.f32.mxu0 0.0
        %787 = vmatmul.mubr.f32.gmra.mrb[0].mxu0 %v623
        %v788 = vpop.f32.mrb[0].mxu0
        %v789 = vadd.f32 %v665, %v788
        %v790 = vpop.f32.mrb[0].mxu0
        %791 = vmatprep.mubr.f32.mxu0 0.0
        %792 = vmatmul.mubr.f32.gmra.mrb[0].mxu0 %v624
        %v793 = vpop.f32.mrb[0].mxu0
        %v794 = vadd.f32 %v665, %v793
        %v795 = vpop.f32.mrb[0].mxu0
        %796 = vmatprep.mubr.f32.mxu0 0.0
        %797 = vmatmul.mubr.f32.gmra.mrb[0].mxu0 %v625
        %v798 = vpop.f32.mrb[0].mxu0
        %v799 = vadd.f32 %v665, %v798
        %v800 = vpop.f32.mrb[0].mxu0
        %801 = vmatprep.mubr.f32.mxu0 0.0
        %802 = vmatmul.mubr.f32.gmra.mrb[0].mxu0 %v626
        %v803 = vpop.f32.mrb[0].mxu0
        %v804 = vadd.f32 %v665, %v803
        %v805 = vpop.f32.mrb[0].mxu0
        %806 = vmatprep.mubr.f32.mxu0 0.0
        %807 = vmatmul.mubr.f32.gmra.mrb[0].mxu0 %v627
        %v808 = vpop.f32.mrb[0].mxu0
        %v809 = vadd.f32 %v665, %v808
        %v810 = vpop.f32.mrb[0].mxu0
        %811 = vmatprep.mubr.f32.mxu0 0.0
        %812 = vmatmul.mubr.f32.gmra.mrb[0].mxu0 %v628
        %v813 = vpop.f32.mrb[0].mxu0
        %v814 = vadd.f32 %v665, %v813
        %v815 = vpop.f32.mrb[0].mxu0
        %816 = vmatprep.mubr.f32.mxu0 0.0
        %817 = vmatmul.mubr.f32.gmra.mrb[0].mxu0 %v629
        %v818 = vpop.f32.mrb[0].mxu0
        %v819 = vadd.f32 %v665, %v818
        %v820 = vpop.f32.mrb[0].mxu0
        %821 = vmatprep.mubr.f32.mxu0 0.0
        %822 = vmatmul.mubr.f32.gmra.mrb[0].mxu0 %v630
        %v823 = vpop.f32.mrb[0].mxu0
        %v824 = vadd.f32 %v665, %v823
        %v825 = vpop.f32.mrb[0].mxu0
        %826 = vmatprep.mubr.f32.mxu0 0.0
        %827 = vmatmul.mubr.f32.gmra.mrb[0].mxu0 %v631
        %v828 = vpop.f32.mrb[0].mxu0
        %v829 = vadd.f32 %v665, %v828
        %v830 = vpop.f32.mrb[0].mxu0
        %831 = vmatprep.mubr.f32.mxu0 0.0
        %832 = vmatmul.mubr.f32.gmra.mrb[0].mxu0 %v632
        %v833 = vpop.f32.mrb[0].mxu0
        %v834 = vadd.f32 %v665, %v833
        %v835 = vpop.f32.mrb[0].mxu0
        %836 = vmatprep.mubr.f32.mxu0 0.0
        %837 = vmatmul.mubr.f32.gmra.mrb[0].mxu0 %v633
        %v838 = vpop.f32.mrb[0].mxu0
        %v839 = vadd.f32 %v665, %v838
        %v840 = vpop.f32.mrb[0].mxu0
        %841 = vmatprep.mubr.f32.mxu0 0.0
        %842 = vmatmul.mubr.f32.gmra.mrb[0].mxu0 %v634
        %v843 = vpop.f32.mrb[0].mxu0
        %v844 = vadd.f32 %v665, %v843
        %v845 = vpop.f32.mrb[0].mxu0
        %846 = vmatprep.mubr.f32.mxu0 0.0
        %847 = vmatmul.mubr.f32.gmra.mrb[0].mxu0 %v635
        %v848 = vpop.f32.mrb[0].mxu0
        %v849 = vadd.f32 %v665, %v848
        %v850 = vpop.f32.mrb[0].mxu0
        %851 = vmatprep.mubr.f32.mxu0 0.0
        %852 = vmatmul.mubr.f32.gmra.mrb[0].mxu0 %v636
        %v853 = vpop.f32.mrb[0].mxu0
        %v854 = vadd.f32 %v665, %v853
        %v855 = vpop.f32.mrb[0].mxu0
        %856 = vmatprep.mubr.f32.mxu0 0.0
        %857 = vmatmul.mubr.f32.gmra.mrb[0].mxu0 %v637
        %v858 = vpop.f32.mrb[0].mxu0
        %v859 = vadd.f32 %v665, %v858
        %v860 = vpop.f32.mrb[0].mxu0
        %861 = vmatprep.mubr.f32.mxu0 0.0
        %862 = vmatmul.mubr.f32.gmra.mrb[0].mxu0 %v638
        %v863 = vpop.f32.mrb[0].mxu0
        %v864 = vadd.f32 %v665, %v863
        %v865 = vpop.f32.mrb[0].mxu0
        %866 = vmatprep.mubr.f32.mxu0 0.0
        %867 = vmatmul.mubr.f32.gmra.mrb[0].mxu0 %v639
        %v868 = vpop.f32.mrb[0].mxu0
        %v869 = vadd.f32 %v665, %v868
        %v870 = vpop.f32.mrb[0].mxu0
        %871 = vmatprep.mubr.f32.mxu0 0.0
        %872 = vmatmul.mubr.f32.gmra.mrb[0].mxu0 %v640
        %v873 = vpop.f32.mrb[0].mxu0
        %v874 = vadd.f32 %v665, %v873
        %v875 = vpop.f32.mrb[0].mxu0
        %876 = vmatprep.mubr.f32.mxu0 0.0
        %877 = vmatmul.mubr.f32.gmra.mrb[0].mxu0 %v641
        %v878 = vpop.f32.mrb[0].mxu0
        %v879 = vadd.f32 %v665, %v878
        %v880 = vpop.f32.mrb[0].mxu0
        %881 = vmatprep.mubr.f32.mxu0 0.0
        %882 = vmatmul.mubr.f32.gmra.mrb[0].mxu0 %v642
        %v883 = vpop.f32.mrb[0].mxu0
        %v884 = vadd.f32 %v665, %v883
        %v885 = vpop.f32.mrb[0].mxu0
        %886 = vmatprep.mubr.f32.mxu0 0.0
        %887 = vmatmul.mubr.f32.gmra.mrb[0].mxu0 %v643
        %v888 = vpop.f32.mrb[0].mxu0
        %v889 = vadd.f32 %v665, %v888
        %v890 = vpop.f32.mrb[0].mxu0
        %891 = vdwg.mxu0
        %v892 = vxor.u32 %v734, 2147483648
        %v893 = vxor.u32 %v739, 2147483648
        %v894 = vxor.u32 %v744, 2147483648
        %v895 = vxor.u32 %v749, 2147483648
        %v896 = vxor.u32 %v754, 2147483648
        %v897 = vxor.u32 %v759, 2147483648
        %v898 = vxor.u32 %v764, 2147483648
        %v899 = vxor.u32 %v769, 2147483648
        %v900 = vxor.u32 %v774, 2147483648
        %v901 = vxor.u32 %v779, 2147483648
        %v902 = vxor.u32 %v784, 2147483648
        %v903 = vxor.u32 %v789, 2147483648
        %v904 = vxor.u32 %v794, 2147483648
        %v905 = vxor.u32 %v799, 2147483648
        %v906 = vxor.u32 %v804, 2147483648
        %v907 = vxor.u32 %v809, 2147483648
        %v908 = vxor.u32 %v814, 2147483648
        %v909 = vxor.u32 %v819, 2147483648
        %v910 = vxor.u32 %v824, 2147483648
        %v911 = vxor.u32 %v829, 2147483648
        %v912 = vxor.u32 %v834, 2147483648
        %v913 = vxor.u32 %v839, 2147483648
        %v914 = vxor.u32 %v844, 2147483648
        %v915 = vxor.u32 %v849, 2147483648
        %v916 = vxor.u32 %v854, 2147483648
        %v917 = vxor.u32 %v859, 2147483648
        %v918 = vxor.u32 %v864, 2147483648
        %v919 = vxor.u32 %v869, 2147483648
        %v920 = vxor.u32 %v874, 2147483648
        %v921 = vxor.u32 %v879, 2147483648
        %v922 = vxor.u32 %v884, 2147483648
        %v923 = vxor.u32 %v889, 2147483648
        %v924 = vmul.f32 %v892, 1.442695
        %v925 = vpow.pop %v924
        %v926 = vmul.f32 %v893, 1.442695
        %v927 = vpow.pop %v926
        %v928 = vmul.f32 %v894, 1.442695
        %v929 = vpow.pop %v928
        %v930 = vmul.f32 %v895, 1.442695
        %v931 = vpow.pop %v930
        %v932 = vmul.f32 %v896, 1.442695
        %v933 = vpow.pop %v932
        %v934 = vmul.f32 %v897, 1.442695
        %v935 = vpow.pop %v934
        %v936 = vmul.f32 %v898, 1.442695
        %v937 = vpow.pop %v936
        %v938 = vmul.f32 %v899, 1.442695
        %v939 = vpow.pop %v938
        %v940 = vmul.f32 %v900, 1.442695
        %v941 = vpow.pop %v940
        %v942 = vmul.f32 %v901, 1.442695
        %v943 = vpow.pop %v942
        %v944 = vmul.f32 %v902, 1.442695
        %v945 = vpow.pop %v944
        %v946 = vmul.f32 %v903, 1.442695
        %v947 = vpow.pop %v946
        %v948 = vmul.f32 %v904, 1.442695
        %v949 = vpow.pop %v948
        %v950 = vmul.f32 %v905, 1.442695
        %v951 = vpow.pop %v950
        %v952 = vmul.f32 %v906, 1.442695
        %v953 = vpow.pop %v952
        %v954 = vmul.f32 %v907, 1.442695
        %v955 = vpow.pop %v954
        %v956 = vmul.f32 %v908, 1.442695
        %v957 = vpow.pop %v956
        %v958 = vmul.f32 %v909, 1.442695
        %v959 = vpow.pop %v958
        %v960 = vmul.f32 %v910, 1.442695
        %v961 = vpow.pop %v960
        %v962 = vmul.f32 %v911, 1.442695
        %v963 = vpow.pop %v962
        %v964 = vmul.f32 %v912, 1.442695
        %v965 = vpow.pop %v964
        %v966 = vmul.f32 %v913, 1.442695
        %v967 = vpow.pop %v966
        %v968 = vmul.f32 %v914, 1.442695
        %v969 = vpow.pop %v968
        %v970 = vmul.f32 %v915, 1.442695
        %v971 = vpow.pop %v970
        %v972 = vmul.f32 %v916, 1.442695
        %v973 = vpow.pop %v972
        %v974 = vmul.f32 %v917, 1.442695
        %v975 = vpow.pop %v974
        %v976 = vmul.f32 %v918, 1.442695
        %v977 = vpow.pop %v976
        %v978 = vmul.f32 %v919, 1.442695
        %v979 = vpow.pop %v978
        %v980 = vmul.f32 %v920, 1.442695
        %v981 = vpow.pop %v980
        %v982 = vmul.f32 %v921, 1.442695
        %v983 = vpow.pop %v982
        %v984 = vmul.f32 %v922, 1.442695
        %v985 = vpow.pop %v984
        %v986 = vmul.f32 %v923, 1.442695
        %v987 = vpow.pop %v986
        %v988 = vadd.f32 %v925, 1.0
        %v989 = vadd.f32 %v927, 1.0
        %v990 = vadd.f32 %v929, 1.0
        %v991 = vadd.f32 %v931, 1.0
        %v992 = vadd.f32 %v933, 1.0
        %v993 = vadd.f32 %v935, 1.0
        %v994 = vadd.f32 %v937, 1.0
        %v995 = vadd.f32 %v939, 1.0
        %v996 = vadd.f32 %v941, 1.0
        %v997 = vadd.f32 %v943, 1.0
        %v998 = vadd.f32 %v945, 1.0
        %v999 = vadd.f32 %v947, 1.0
        %v1000 = vadd.f32 %v949, 1.0
        %v1001 = vadd.f32 %v951, 1.0
        %v1002 = vadd.f32 %v953, 1.0
        %v1003 = vadd.f32 %v955, 1.0
        %v1004 = vadd.f32 %v957, 1.0
        %v1005 = vadd.f32 %v959, 1.0
        %v1006 = vadd.f32 %v961, 1.0
        %v1007 = vadd.f32 %v963, 1.0
        %v1008 = vadd.f32 %v965, 1.0
        %v1009 = vadd.f32 %v967, 1.0
        %v1010 = vadd.f32 %v969, 1.0
        %v1011 = vadd.f32 %v971, 1.0
        %v1012 = vadd.f32 %v973, 1.0
        %v1013 = vadd.f32 %v975, 1.0
        %v1014 = vadd.f32 %v977, 1.0
        %v1015 = vadd.f32 %v979, 1.0
        %v1016 = vadd.f32 %v981, 1.0
        %v1017 = vadd.f32 %v983, 1.0
        %v1018 = vadd.f32 %v985, 1.0
        %v1019 = vadd.f32 %v987, 1.0
        %v1020 = vrcp.pop %v988
        %v1021 = vmul.f32 1.0, %v1020
        %v1022 = vrcp.pop %v989
        %v1023 = vmul.f32 1.0, %v1022
        %v1024 = vrcp.pop %v990
        %v1025 = vmul.f32 1.0, %v1024
        %v1026 = vrcp.pop %v991
        %v1027 = vmul.f32 1.0, %v1026
        %v1028 = vrcp.pop %v992
        %v1029 = vmul.f32 1.0, %v1028
        %v1030 = vrcp.pop %v993
        %v1031 = vmul.f32 1.0, %v1030
        %v1032 = vrcp.pop %v994
        %v1033 = vmul.f32 1.0, %v1032
        %v1034 = vrcp.pop %v995
        %v1035 = vmul.f32 1.0, %v1034
        %v1036 = vrcp.pop %v996
        %v1037 = vmul.f32 1.0, %v1036
        %v1038 = vrcp.pop %v997
        %v1039 = vmul.f32 1.0, %v1038
        %v1040 = vrcp.pop %v998
        %v1041 = vmul.f32 1.0, %v1040
        %v1042 = vrcp.pop %v999
        %v1043 = vmul.f32 1.0, %v1042
        %v1044 = vrcp.pop %v1000
        %v1045 = vmul.f32 1.0, %v1044
        %v1046 = vrcp.pop %v1001
        %v1047 = vmul.f32 1.0, %v1046
        %v1048 = vrcp.pop %v1002
        %v1049 = vmul.f32 1.0, %v1048
        %v1050 = vrcp.pop %v1003
        %v1051 = vmul.f32 1.0, %v1050
        %v1052 = vrcp.pop %v1004
        %v1053 = vmul.f32 1.0, %v1052
        %v1054 = vrcp.pop %v1005
        %v1055 = vmul.f32 1.0, %v1054
        %v1056 = vrcp.pop %v1006
        %v1057 = vmul.f32 1.0, %v1056
        %v1058 = vrcp.pop %v1007
        %v1059 = vmul.f32 1.0, %v1058
        %v1060 = vrcp.pop %v1008
        %v1061 = vmul.f32 1.0, %v1060
        %v1062 = vrcp.pop %v1009
        %v1063 = vmul.f32 1.0, %v1062
        %v1064 = vrcp.pop %v1010
        %v1065 = vmul.f32 1.0, %v1064
        %v1066 = vrcp.pop %v1011
        %v1067 = vmul.f32 1.0, %v1066
        %v1068 = vrcp.pop %v1012
        %v1069 = vmul.f32 1.0, %v1068
        %v1070 = vrcp.pop %v1013
        %v1071 = vmul.f32 1.0, %v1070
        %v1072 = vrcp.pop %v1014
        %v1073 = vmul.f32 1.0, %v1072
        %v1074 = vrcp.pop %v1015
        %v1075 = vmul.f32 1.0, %v1074
        %v1076 = vrcp.pop %v1016
        %v1077 = vmul.f32 1.0, %v1076
        %v1078 = vrcp.pop %v1017
        %v1079 = vmul.f32 1.0, %v1078
        %v1080 = vrcp.pop %v1018
        %v1081 = vmul.f32 1.0, %v1080
        %v1082 = vrcp.pop %v1019
        %v1083 = vmul.f32 1.0, %v1082
        %1084 = vst [vmem:[%s245] sm:$0xff] %v1021
        %1085 = vst [vmem:[%s245 + $0x8] sm:$0xff] %v1023
        %1086 = vst [vmem:[%s245 + $0x10] sm:$0xff] %v1025
        %1087 = vst [vmem:[%s245 + $0x18] sm:$0xff] %v1027
        %1088 = vst [vmem:[%s245 + $0x20] sm:$0xff] %v1029
        %1089 = vst [vmem:[%s245 + $0x28] sm:$0xff] %v1031
        %1090 = vst [vmem:[%s245 + $0x30] sm:$0xff] %v1033
        %1091 = vst [vmem:[%s245 + $0x38] sm:$0xff] %v1035
        %1092 = vst [vmem:[%s245 + $0x40] sm:$0xff] %v1037
        %1093 = vst [vmem:[%s245 + $0x48] sm:$0xff] %v1039
        %1094 = vst [vmem:[%s245 + $0x50] sm:$0xff] %v1041
        %1095 = vst [vmem:[%s245 + $0x58] sm:$0xff] %v1043
        %1096 = vst [vmem:[%s245 + $0x60] sm:$0xff] %v1045
        %1097 = vst [vmem:[%s245 + $0x68] sm:$0xff] %v1047
        %1098 = vst [vmem:[%s245 + $0x70] sm:$0xff] %v1049
        %1099 = vst [vmem:[%s245 + $0x78] sm:$0xff] %v1051
        %1100 = vst [vmem:[%s245 + $0x80] sm:$0xff] %v1053
        %1101 = vst [vmem:[%s245 + $0x88] sm:$0xff] %v1055
        %1102 = vst [vmem:[%s245 + $0x90] sm:$0xff] %v1057
        %1103 = vst [vmem:[%s245 + $0x98] sm:$0xff] %v1059
        %1104 = vst [vmem:[%s245 + $0xa0] sm:$0xff] %v1061
        %1105 = vst [vmem:[%s245 + $0xa8] sm:$0xff] %v1063
        %1106 = vst [vmem:[%s245 + $0xb0] sm:$0xff] %v1065
        %1107 = vst [vmem:[%s245 + $0xb8] sm:$0xff] %v1067
        %1108 = vst [vmem:[%s245 + $0xc0] sm:$0xff] %v1069
        %1109 = vst [vmem:[%s245 + $0xc8] sm:$0xff] %v1071
        %1110 = vst [vmem:[%s245 + $0xd0] sm:$0xff] %v1073
        %1111 = vst [vmem:[%s245 + $0xd8] sm:$0xff] %v1075
        %1112 = vst [vmem:[%s245 + $0xe0] sm:$0xff] %v1077
        %1113 = vst [vmem:[%s245 + $0xe8] sm:$0xff] %v1079
        %1114 = vst [vmem:[%s245 + $0xf0] sm:$0xff] %v1081
        %1115 = vst [vmem:[%s245 + $0xf8] sm:$0xff] %v1083
        %s1116 = smul.u32 32, %s19
        %p1117 = scmp.lt.s32.totalorder %s1116, 63
        %s1118 = scalar_select %p1117, %s1116, 63
        %s1119 = smul.addr %s1118, 8
        %s1120 = scalar_lea.vmem %s5, %s1119
        // Predicated region
        $region45: #{spatial_attention_gate.1} parent=39 // pred_check
          %p1121 = pneg %p147
        $region46: #{spatial_attention_gate.1} parent=39 // pred_check_branch
          %1123 = sbr.rel (%p1121) target = $region48
        $region47: #{spatial_attention_gate.1} parent=39 // pred_region
          %s1124 = smul.u32 32, %s19
        $region48: #{spatial_attention_gate.1} parent=39 // pred_fallthru
          _
      $region40: #{spatial_attention_gate.1} parent=5 // pred_fallthru
        _
      %p1125 = scmp.le.s32.totalorder 2, %s14
      // Predicated region
      $region49: #{spatial_attention_gate.1} parent=5 // pred_check
        %p1126 = pneg %p1125
      $region50: #{spatial_attention_gate.1} parent=5 // pred_check_branch
        %1128 = sbr.rel (%p1126) target = $region52
      $region51: #{spatial_attention_gate.1} parent=5 // pred_region
        %s1129 = ssub.s32 %s14, 2
        // Predicated region
        $region53: #{spatial_attention_gate.1} parent=51 // pred_check
          %p1130 = pneg %p153
        $region54: #{spatial_attention_gate.1} parent=51 // pred_check_branch
          %1132 = sbr.rel (%p1130) target = $region56
        $region55: #{spatial_attention_gate.1} parent=51 // pred_region
          %s1133 = smul.u32 32, %s20
          %p1134 = scmp.lt.s32.totalorder %s1133, 63
          %s1135 = scalar_select %p1134, %s1133, 63
          %s1136 = smul.addr %s1135, 8
          %s1137 = scalar_lea.vmem %s5, %s1136
        $region56: #{spatial_attention_gate.1} parent=51 // pred_fallthru
          _
      $region52: #{spatial_attention_gate.1} parent=5 // pred_fallthru
        _
    $region6: #{spatial_attention_gate.1} parent=1 // loop_footer
      %s18 = sadd.s32 1, %s14
    $region7: #{spatial_attention_gate.1} parent=1 // loop_footer_branch
      %13 = sbr.rel target = $region3
    $region8: #{spatial_attention_gate.1} parent=1 // loop_exit
      _
    %1138 = vsyncpa [#allocation3], 1
    %s1139 = scalar_lea.sflag [#allocation3], 1
    %1140 = vsyncpa %s1139, 1

</llo_original>
